<compile_context>
chip_gen: v5e
topology: v5e:2x2
jax: 0.10.0
libtpu: 0.0.40
codegen_flags: <defaults>
</compile_context>

<pallas_src>
import functools

import jax
import jax.numpy as jnp
from jax.experimental import pallas as pl
from jax.experimental.pallas import tpu as pltpu

LANES = 128
SUBLANES = 8


def _l2_kernel(est_ref, gt_ref, mask_ref, out_ref, acc_ref, *,
               valid_rows, needs_mask):
    """One (core, step) grid point of the streaming masked-L2 reduction."""
    c = pl.program_id(0)
    step = pl.program_id(1)
    steps = pl.num_programs(1)
    tile_rows = est_ref.shape[0]

    # Zero this core's persistent accumulators at the start of its slice.
    @pl.when(step == 0)
    def _():
        acc_ref[...] = jnp.zeros_like(acc_ref)

    est = est_ref[...].astype(jnp.float32)
    gt = gt_ref[...].astype(jnp.float32)
    w = mask_ref[...].astype(jnp.float32)
    d = est - gt

    def accumulate(weight, sq):
        # Full-vreg accumulation: fold (tile_rows, 128) -> (r, 8, 128) and sum
        # over the outer axis (pure VPU vreg adds; no per-step XLU work).
        r = tile_rows // SUBLANES
        acc_ref[0] += jnp.sum(sq.reshape(r, SUBLANES, LANES), axis=0)
        acc_ref[1] += jnp.sum(weight.reshape(r, SUBLANES, LANES), axis=0)

    if not needs_mask:
        # Statically known: every block is fully in-bounds -> no masking ops.
        accumulate(w, w * d * d)
    else:
        row0 = (c * steps + step) * tile_rows
        block_full = row0 + tile_rows <= valid_rows

        @pl.when(block_full)
        def _():
            accumulate(w, w * d * d)

        @pl.when(jnp.logical_not(block_full))
        def _():
            # Partial / out-of-range block: rows beyond the array hold stale
            # VMEM garbage (Pallas clips the edge DMA), so select them away
            # (jnp.where, not multiply, so NaN/Inf garbage never propagates).
            rid = jax.lax.broadcasted_iota(jnp.int32, (tile_rows, LANES), 0)
            valid = (row0 + rid) < valid_rows
            wv = jnp.where(valid, w, 0.0)
            dv = jnp.where(valid, d, 0.0)
            accumulate(wv, wv * dv * dv)

    # Finalize this core's partial sums: collapse sublanes once, keep lanes.
    @pl.when(step == steps - 1)
    def _():
        out_ref[0, 0:1, :] = jnp.sum(acc_ref[0], axis=0, keepdims=True)
        out_ref[0, 1:2, :] = jnp.sum(acc_ref[1], axis=0, keepdims=True)


def _tpu_defaults():
    """Per-generation (core_split, tile_rows, axis0_semantics, vmem_limit)."""
    kind = ""
    try:
        dev = jax.devices()[0]
        if dev.platform == "tpu":
            kind = dev.device_kind.lower()
    except Exception:
        pass
    if "v7" in kind:
        # 2 TensorCores / chip: genuinely shard the stream across both and use
        # 4096-row tiles so the ~0.35us/step overhead stays small at 3.2 TB/s.
        # Explicit scoped-VMEM budget covers 3 inputs x 2 buffers (~13 MiB f32).
        return 2, 4096, pltpu.CORE_PARALLEL, 40 * 1024 * 1024
    if "v6" in kind:
        # Single TC; 2048-row f32 blocks double-buffered ~= 6 MiB < 32 MiB default.
        return 1, 2048, pltpu.ARBITRARY, None
    if "v5" in kind:
        # v5e: 16 MiB scoped default still fits 2048-row blocks comfortably.
        return 1, 2048, pltpu.ARBITRARY, None
    return 1, 1024, pltpu.ARBITRARY, None


def l2_loss(depth_est, depth_gt, mask, *, max_tile_rows=None, core_split=None):
    """sum(mask * (depth_est - depth_gt)**2) / sum(mask), as a float32 scalar."""
    d_split, d_tile, d_sem0, vmem_limit = _tpu_defaults()
    if core_split is None:
        core_split = d_split
        sem0 = d_sem0
    else:
        core_split = int(core_split)
        # Only use CORE_PARALLEL when the split matches the detected chip.
        sem0 = d_sem0 if core_split == d_split else pltpu.ARBITRARY
    cfg_tile = d_tile if max_tile_rows is None else int(max_tile_rows)
    cfg_tile = max(32, (cfg_tile // 32) * 32)

    est = depth_est.reshape(-1)
    gt = depth_gt.reshape(-1)
    m = mask.reshape(-1)

    n = est.shape[0]
    rows = -(-n // LANES)                                 # ceil(n / 128)
    # Tile rows: multiple of 32 (keeps sub-32-bit mask blocks natively tiled),
    # never larger than the array so no padding is required for it.
    tile_rows = min(cfg_tile, (rows // 32) * 32) if rows >= 32 else 32
    rows_arr = max(rows, tile_rows)

    # Padding only happens when unavoidable: n not a multiple of 128, or the
    # whole input is smaller than one 32-row tile.  Common depth-map shapes
    # (n % 128 == 0, n >= 4096) stream with NO extra HBM copy — the block
    # granularity remainder is handled by in-kernel tail masking instead.
    pad = rows_arr * LANES - n
    if pad:
        est = jnp.pad(est, (0, pad))
        gt = jnp.pad(gt, (0, pad))
        m = jnp.pad(m, (0, pad))

    est2 = est.reshape(rows_arr, LANES)
    gt2 = gt.reshape(rows_arr, LANES)
    m2 = m.reshape(rows_arr, LANES)

    steps = -(-rows_arr // (core_split * tile_rows))
    # Masking is only needed when the block grid overhangs the array.
    needs_mask = (rows_arr % (core_split * tile_rows)) != 0
    last_block = (rows_arr - 1) // tile_rows

    def in_map(c, i):
        # Clamp so a block's start never lies past the array (excess blocks of
        # the core split re-read the last block; the kernel masks them to 0).
        return (jnp.minimum(c * steps + i, last_block), 0)

    kernel = functools.partial(_l2_kernel, valid_rows=rows_arr,
                               needs_mask=needs_mask)

    def run(mask_2d):
        return pl.pallas_call(
            kernel,
            out_shape=jax.ShapeDtypeStruct((core_split, 2, LANES), jnp.float32),
            grid_spec=pltpu.PrefetchScalarGridSpec(
                num_scalar_prefetch=0,
                grid=(core_split, steps),
                in_specs=[
                    pl.BlockSpec((tile_rows, LANES), in_map),
                    pl.BlockSpec((tile_rows, LANES), in_map),
                    pl.BlockSpec((tile_rows, LANES), in_map),
                ],
                out_specs=pl.BlockSpec((1, 2, LANES), lambda c, i: (c, 0, 0)),
                scratch_shapes=[pltpu.VMEM((2, SUBLANES, LANES), jnp.float32)],
            ),
            compiler_params=pltpu.CompilerParams(
                dimension_semantics=(sem0, pltpu.ARBITRARY),
                vmem_limit_bytes=vmem_limit,
            ),
        )(est2, gt2, mask_2d)

    if m2.dtype == jnp.bool_:
        # Feed the bool mask directly (1 B/elem on the wire, widened in-kernel,
        # no extra XLA convert pass).  Fall back to a one-off int8 widening if
        # this Pallas/Mosaic build rejects bool VMEM refs.
        try:
            partials = run(m2)
        except Exception:
            partials = run(m2.astype(jnp.int8))
    else:
        partials = run(m2)

    loss_sum = jnp.sum(partials[:, 0, :])
    mask_sum = jnp.sum(partials[:, 1, :])
    # NOTE: like the PyTorch module, an all-zero mask yields 0/0 -> NaN.
    return loss_sum / mask_sum


def _l2_reference(depth_est, depth_gt, mask):
    mf = mask.astype(jnp.float32)
    diff = depth_est.astype(jnp.float32) - depth_gt.astype(jnp.float32)
    return jnp.sum(mf * diff * diff) / jnp.sum(mf)


if __name__ == "__main__":
    key = jax.random.PRNGKey(0)
    k1, k2, k3 = jax.random.split(key, 3)

    # 1) Small depth-map-like NCHW input with a boolean mask.
    shape = (2, 1, 16, 16)
    de = jax.random.uniform(k1, shape, jnp.float32, 0.5, 10.0)
    dg = jax.random.uniform(k2, shape, jnp.float32, 0.5, 10.0)
    mk = jax.random.uniform(k3, shape, jnp.float32) > 0.3
    out = jax.block_until_ready(l2_loss(de, dg, mk))
    ref = jax.block_until_ready(_l2_reference(de, dg, mk))
    assert jnp.allclose(out, ref, rtol=1e-4, atol=1e-6), (out, ref)

    # 2) Row count not a multiple of the tile: exercises the new no-pad,
    #    in-kernel tail-masked path (160 rows, 64-row tiles, last block partial).
    shape = (2, 1, 80, 128)
    de = jax.random.uniform(k1, shape, jnp.float32, 0.5, 10.0)
    dg = jax.random.uniform(k2, shape, jnp.float32, 0.5, 10.0)
    mk = jax.random.uniform(k3, shape, jnp.float32) > 0.3
    out = jax.block_until_ready(l2_loss(de, dg, mk, max_tile_rows=64))
    ref = jax.block_until_ready(_l2_reference(de, dg, mk))
    assert jnp.allclose(out, ref, rtol=1e-4, atol=1e-6), (out, ref)

    # 3) Multi-step accumulation + forced 2-way core split (float mask).
    shape = (2, 1, 64, 128)
    de = jax.random.uniform(k1, shape, jnp.float32, 0.5, 10.0)
    dg = jax.random.uniform(k2, shape, jnp.float32, 0.5, 10.0)
    mk = (jax.random.uniform(k3, shape, jnp.float32) > 0.3).astype(jnp.float32)
    out = jax.block_until_ready(l2_loss(de, dg, mk, max_tile_rows=32, core_split=2))
    ref = jax.block_until_ready(_l2_reference(de, dg, mk))
    assert jnp.allclose(out, ref, rtol=1e-4, atol=1e-6), (out, ref)

    # 4) Ragged size (not a multiple of 128) with float-valued mask weights.
    shape = (2, 3, 7, 11)
    de = jax.random.uniform(k1, shape, jnp.float32, 0.5, 10.0)
    dg = jax.random.uniform(k2, shape, jnp.float32, 0.5, 10.0)
    mk = jax.random.uniform(k3, shape, jnp.float32)
    out = jax.block_until_ready(l2_loss(de, dg, mk))
    ref = jax.block_until_ready(_l2_reference(de, dg, mk))
    assert jnp.allclose(out, ref, rtol=1e-4, atol=1e-6), (out, ref)

    # 5) Forced 2-way split where one core's block lies entirely past the data
    #    (exercises the clamped index map + full-block mask-out).
    shape = (2, 1, 16, 16)
    de = jax.random.uniform(k1, shape, jnp.float32, 0.5, 10.0)
    dg = jax.random.uniform(k2, shape, jnp.float32, 0.5, 10.0)
    mk = jax.random.uniform(k3, shape, jnp.float32) > 0.3
    out = jax.block_until_ready(l2_loss(de, dg, mk, core_split=2))
    ref = jax.block_until_ready(_l2_reference(de, dg, mk))
    assert jnp.allclose(out, ref, rtol=1e-4, atol=1e-6), (out, ref)

    print("KERNEL_OK")
</pallas_src>

<mosaic_0001>
module attributes {stable_mosaic.version = 11 : i64} {
  func.func @_l2_kernel(%arg0: i32, %arg1: i32, %arg2: memref<32x128xf32, #tpu.memory_space<vmem>>, %arg3: memref<32x128xf32, #tpu.memory_space<vmem>>, %arg4: memref<32x128xi32, #tpu.memory_space<vmem>>, %arg5: memref<1x2x128xf32, #tpu.memory_space<vmem>>, %arg6: memref<2x8x128xf32, #tpu.memory_space<vmem>>) attributes {dimension_semantics = [#tpu.dimension_semantics<arbitrary>, #tpu.dimension_semantics<arbitrary>], iteration_bounds = array<i64: 1, 1>, scalar_prefetch = 0 : i64, scratch_operands = 1 : i64, tpu.core_type = #tpu.core_type<tc>, window_params = [{transform_indices = @transform_0, window_bounds = array<i64: 32, 128>}, {transform_indices = @transform_1, window_bounds = array<i64: 32, 128>}, {transform_indices = @transform_2, window_bounds = array<i64: 32, 128>}, {transform_indices = @transform_3, window_bounds = array<i64: 1, 2, 128>}]} {
    %c0_i32 = arith.constant 0 : i32
    %0 = arith.cmpi eq, %arg1, %c0_i32 : i32
    %1 = arith.extui %0 : i1 to i32
    %c0_i32_0 = arith.constant 0 : i32
    %2 = arith.cmpi ne, %1, %c0_i32_0 : i32
    scf.if %2 {
      %cst_21 = arith.constant 0.000000e+00 : f32
      %31 = vector.broadcast %cst_21 : f32 to vector<2x8x128xf32>
      %c0_22 = arith.constant 0 : index
      %c0_23 = arith.constant 0 : index
      %c0_24 = arith.constant 0 : index
      %32 = vector.load %arg6[%c0_22, %c0_23, %c0_24] : memref<2x8x128xf32, #tpu.memory_space<vmem>>, vector<2x8x128xf32>
      tpu.vector_store %arg6[%c0_22, %c0_23, %c0_24], %31 {strides = array<i32>} : memref<2x8x128xf32, #tpu.memory_space<vmem>>, vector<2x8x128xf32>,
    } else {
    }
    %c0 = arith.constant 0 : index
    %c0_1 = arith.constant 0 : index
    %3 = vector.load %arg2[%c0, %c0_1] : memref<32x128xf32, #tpu.memory_space<vmem>>, vector<32x128xf32>
    %c0_2 = arith.constant 0 : index
    %c0_3 = arith.constant 0 : index
    %4 = vector.load %arg3[%c0_2, %c0_3] : memref<32x128xf32, #tpu.memory_space<vmem>>, vector<32x128xf32>
    %c0_4 = arith.constant 0 : index
    %c0_5 = arith.constant 0 : index
    %5 = vector.load %arg4[%c0_4, %c0_5] : memref<32x128xi32, #tpu.memory_space<vmem>>, vector<32x128xi32>
    %cst = arith.constant dense<0> : vector<32x128xi32>
    %6 = arith.cmpi ne, %5, %cst : vector<32x128xi32>
    %7 = arith.extui %6 : vector<32x128xi1> to vector<32x128xi32>
    %8 = arith.sitofp %7 : vector<32x128xi32> to vector<32x128xf32>
    %9 = arith.subf %3, %4 : vector<32x128xf32>
    %10 = arith.mulf %8, %9 : vector<32x128xf32>
    %11 = arith.mulf %10, %9 : vector<32x128xf32>
    %c0_6 = arith.constant 0 : index
    %c0_7 = arith.constant 0 : index
    %c0_8 = arith.constant 0 : index
    %12 = vector.load %arg6[%c0_6, %c0_7, %c0_8] : memref<2x8x128xf32, #tpu.memory_space<vmem>>, vector<1x8x128xf32>
    %13 = vector.shape_cast %12 : vector<1x8x128xf32> to vector<8x128xf32>
    %14 = vector.shape_cast %11 : vector<32x128xf32> to vector<4x8x128xf32>
    %cst_9 = arith.constant dense<0.000000e+00> : vector<8x128xf32>
    %15 = vector.multi_reduction <add>, %14, %cst_9 [0] : vector<4x8x128xf32> to vector<8x128xf32>
    %16 = arith.addf %13, %15 : vector<8x128xf32>
    %c0_10 = arith.constant 0 : index
    %c0_11 = arith.constant 0 : index
    %c0_12 = arith.constant 0 : index
    %17 = vector.load %arg6[%c0_10, %c0_11, %c0_12] : memref<2x8x128xf32, #tpu.memory_space<vmem>>, vector<1x8x128xf32>
    %18 = vector.shape_cast %17 : vector<1x8x128xf32> to vector<8x128xf32>
    %19 = vector.shape_cast %16 : vector<8x128xf32> to vector<1x8x128xf32>
    tpu.vector_store %arg6[%c0_10, %c0_11, %c0_12], %19 {strides = array<i32>} : memref<2x8x128xf32, #tpu.memory_space<vmem>>, vector<1x8x128xf32>,
    %c1 = arith.constant 1 : index
    %c0_13 = arith.constant 0 : index
    %c0_14 = arith.constant 0 : index
    %20 = vector.load %arg6[%c1, %c0_13, %c0_14] : memref<2x8x128xf32, #tpu.memory_space<vmem>>, vector<1x8x128xf32>
    %21 = vector.shape_cast %20 : vector<1x8x128xf32> to vector<8x128xf32>
    %22 = vector.shape_cast %8 : vector<32x128xf32> to vector<4x8x128xf32>
    %cst_15 = arith.constant dense<0.000000e+00> : vector<8x128xf32>
    %23 = vector.multi_reduction <add>, %22, %cst_15 [0] : vector<4x8x128xf32> to vector<8x128xf32>
    %24 = arith.addf %21, %23 : vector<8x128xf32>
    %c1_16 = arith.constant 1 : index
    %c0_17 = arith.constant 0 : index
    %c0_18 = arith.constant 0 : index
    %25 = vector.load %arg6[%c1_16, %c0_17, %c0_18] : memref<2x8x128xf32, #tpu.memory_space<vmem>>, vector<1x8x128xf32>
    %26 = vector.shape_cast %25 : vector<1x8x128xf32> to vector<8x128xf32>
    %27 = vector.shape_cast %24 : vector<8x128xf32> to vector<1x8x128xf32>
    tpu.vector_store %arg6[%c1_16, %c0_17, %c0_18], %27 {strides = array<i32>} : memref<2x8x128xf32, #tpu.memory_space<vmem>>, vector<1x8x128xf32>,
    %c0_i32_19 = arith.constant 0 : i32
    %28 = arith.cmpi eq, %arg1, %c0_i32_19 : i32
    %29 = arith.extui %28 : i1 to i32
    %c0_i32_20 = arith.constant 0 : i32
    %30 = arith.cmpi ne, %29, %c0_i32_20 : i32
    scf.if %30 {
      %c0_21 = arith.constant 0 : index
      %c0_22 = arith.constant 0 : index
      %c0_23 = arith.constant 0 : index
      %31 = vector.load %arg6[%c0_21, %c0_22, %c0_23] : memref<2x8x128xf32, #tpu.memory_space<vmem>>, vector<1x8x128xf32>
      %32 = vector.shape_cast %31 : vector<1x8x128xf32> to vector<8x128xf32>
      %cst_24 = arith.constant dense<0.000000e+00> : vector<128xf32>
      %33 = vector.multi_reduction <add>, %32, %cst_24 [0] : vector<8x128xf32> to vector<128xf32>
      %34 = vector.shape_cast %33 : vector<128xf32> to vector<1x128xf32>
      %c0_25 = arith.constant 0 : index
      %c0_26 = arith.constant 0 : index
      %c0_27 = arith.constant 0 : index
      %35 = vector.load %arg5[%c0_25, %c0_26, %c0_27] : memref<1x2x128xf32, #tpu.memory_space<vmem>>, vector<1x1x128xf32>
      %36 = vector.shape_cast %35 : vector<1x1x128xf32> to vector<1x128xf32>
      %37 = vector.shape_cast %34 : vector<1x128xf32> to vector<1x1x128xf32>
      tpu.vector_store %arg5[%c0_25, %c0_26, %c0_27], %37 {strides = array<i32>} : memref<1x2x128xf32, #tpu.memory_space<vmem>>, vector<1x1x128xf32>,
      %c1_28 = arith.constant 1 : index
      %c0_29 = arith.constant 0 : index
      %c0_30 = arith.constant 0 : index
      %38 = vector.load %arg6[%c1_28, %c0_29, %c0_30] : memref<2x8x128xf32, #tpu.memory_space<vmem>>, vector<1x8x128xf32>
      %39 = vector.shape_cast %38 : vector<1x8x128xf32> to vector<8x128xf32>
      %cst_31 = arith.constant dense<0.000000e+00> : vector<128xf32>
      %40 = vector.multi_reduction <add>, %39, %cst_31 [0] : vector<8x128xf32> to vector<128xf32>
      %41 = vector.shape_cast %40 : vector<128xf32> to vector<1x128xf32>
      %c0_32 = arith.constant 0 : index
      %c1_33 = arith.constant 1 : index
      %c0_34 = arith.constant 0 : index
      %42 = vector.load %arg5[%c0_32, %c1_33, %c0_34] : memref<1x2x128xf32, #tpu.memory_space<vmem>>, vector<1x1x128xf32>
      %43 = vector.shape_cast %42 : vector<1x1x128xf32> to vector<1x128xf32>
      %44 = vector.shape_cast %41 : vector<1x128xf32> to vector<1x1x128xf32>
      tpu.vector_store %arg5[%c0_32, %c1_33, %c0_34], %44 {strides = array<i32>} : memref<1x2x128xf32, #tpu.memory_space<vmem>>, vector<1x1x128xf32>,
    } else {
    }
    return
  }
  func.func @transform_0(%arg0: i32, %arg1: i32) -> (i32, i32) {
    %c1_i32 = arith.constant 1 : i32
    %0 = arith.muli %arg0, %c1_i32 : i32
    %1 = arith.addi %0, %arg1 : i32
    %c0_i32 = arith.constant 0 : i32
    %2 = arith.minsi %1, %c0_i32 : i32
    %c0_i32_0 = arith.constant 0 : i32
    %c0_i32_1 = arith.constant 0 : i32
    return %2, %c0_i32_0 : i32, i32
  }
  func.func @transform_1(%arg0: i32, %arg1: i32) -> (i32, i32) {
    %c1_i32 = arith.constant 1 : i32
    %0 = arith.muli %arg0, %c1_i32 : i32
    %1 = arith.addi %0, %arg1 : i32
    %c0_i32 = arith.constant 0 : i32
    %2 = arith.minsi %1, %c0_i32 : i32
    %c0_i32_0 = arith.constant 0 : i32
    %c0_i32_1 = arith.constant 0 : i32
    return %2, %c0_i32_0 : i32, i32
  }
  func.func @transform_2(%arg0: i32, %arg1: i32) -> (i32, i32) {
    %c1_i32 = arith.constant 1 : i32
    %0 = arith.muli %arg0, %c1_i32 : i32
    %1 = arith.addi %0, %arg1 : i32
    %c0_i32 = arith.constant 0 : i32
    %2 = arith.minsi %1, %c0_i32 : i32
    %c0_i32_0 = arith.constant 0 : i32
    %c0_i32_1 = arith.constant 0 : i32
    return %2, %c0_i32_0 : i32, i32
  }
  func.func @transform_3(%arg0: i32, %arg1: i32) -> (i32, i32, i32) {
    %c0_i32 = arith.constant 0 : i32
    %c0_i32_0 = arith.constant 0 : i32
    %c0_i32_1 = arith.constant 0 : i32
    return %arg0, %c0_i32, %c0_i32_0 : i32, i32, i32
  }
}

module attributes {stable_mosaic.version = 11 : i64} {
  func.func @_l2_kernel(%arg0: i32, %arg1: i32, %arg2: memref<32x128xf32, #tpu.memory_space<vmem>>, %arg3: memref<32x128xf32, #tpu.memory_space<vmem>>, %arg4: memref<32x128xi8, #tpu.memory_space<vmem>>, %arg5: memref<1x2x128xf32, #tpu.memory_space<vmem>>, %arg6: memref<2x8x128xf32, #tpu.memory_space<vmem>>) attributes {dimension_semantics = [#tpu.dimension_semantics<arbitrary>, #tpu.dimension_semantics<arbitrary>], iteration_bounds = array<i64: 1, 1>, scalar_prefetch = 0 : i64, scratch_operands = 1 : i64, tpu.core_type = #tpu.core_type<tc>, window_params = [{transform_indices = @transform_0, window_bounds = array<i64: 32, 128>}, {transform_indices = @transform_1, window_bounds = array<i64: 32, 128>}, {transform_indices = @transform_2, window_bounds = array<i64: 32, 128>}, {transform_indices = @transform_3, window_bounds = array<i64: 1, 2, 128>}]} {
    %c0_i32 = arith.constant 0 : i32
    %0 = arith.cmpi eq, %arg1, %c0_i32 : i32
    %1 = arith.extui %0 : i1 to i32
    %c0_i32_0 = arith.constant 0 : i32
    %2 = arith.cmpi ne, %1, %c0_i32_0 : i32
    scf.if %2 {
      %cst_20 = arith.constant 0.000000e+00 : f32
      %29 = vector.broadcast %cst_20 : f32 to vector<2x8x128xf32>
      %c0_21 = arith.constant 0 : index
      %c0_22 = arith.constant 0 : index
      %c0_23 = arith.constant 0 : index
      %30 = vector.load %arg6[%c0_21, %c0_22, %c0_23] : memref<2x8x128xf32, #tpu.memory_space<vmem>>, vector<2x8x128xf32>
      tpu.vector_store %arg6[%c0_21, %c0_22, %c0_23], %29 {strides = array<i32>} : memref<2x8x128xf32, #tpu.memory_space<vmem>>, vector<2x8x128xf32>,
    } else {
    }
    %c0 = arith.constant 0 : index
    %c0_1 = arith.constant 0 : index
    %3 = vector.load %arg2[%c0, %c0_1] : memref<32x128xf32, #tpu.memory_space<vmem>>, vector<32x128xf32>
    %c0_2 = arith.constant 0 : index
    %c0_3 = arith.constant 0 : index
    %4 = vector.load %arg3[%c0_2, %c0_3] : memref<32x128xf32, #tpu.memory_space<vmem>>, vector<32x128xf32>
    %c0_4 = arith.constant 0 : index
    %c0_5 = arith.constant 0 : index
    %5 = vector.load %arg4[%c0_4, %c0_5] : memref<32x128xi8, #tpu.memory_space<vmem>>, vector<32x128xi8>
    %6 = arith.sitofp %5 : vector<32x128xi8> to vector<32x128xf32>
    %7 = arith.subf %3, %4 : vector<32x128xf32>
    %8 = arith.mulf %6, %7 : vector<32x128xf32>
    %9 = arith.mulf %8, %7 : vector<32x128xf32>
    %c0_6 = arith.constant 0 : index
    %c0_7 = arith.constant 0 : index
    %c0_8 = arith.constant 0 : index
    %10 = vector.load %arg6[%c0_6, %c0_7, %c0_8] : memref<2x8x128xf32, #tpu.memory_space<vmem>>, vector<1x8x128xf32>
    %11 = vector.shape_cast %10 : vector<1x8x128xf32> to vector<8x128xf32>
    %12 = vector.shape_cast %9 : vector<32x128xf32> to vector<4x8x128xf32>
    %cst = arith.constant dense<0.000000e+00> : vector<8x128xf32>
    %13 = vector.multi_reduction <add>, %12, %cst [0] : vector<4x8x128xf32> to vector<8x128xf32>
    %14 = arith.addf %11, %13 : vector<8x128xf32>
    %c0_9 = arith.constant 0 : index
    %c0_10 = arith.constant 0 : index
    %c0_11 = arith.constant 0 : index
    %15 = vector.load %arg6[%c0_9, %c0_10, %c0_11] : memref<2x8x128xf32, #tpu.memory_space<vmem>>, vector<1x8x128xf32>
    %16 = vector.shape_cast %15 : vector<1x8x128xf32> to vector<8x128xf32>
    %17 = vector.shape_cast %14 : vector<8x128xf32> to vector<1x8x128xf32>
    tpu.vector_store %arg6[%c0_9, %c0_10, %c0_11], %17 {strides = array<i32>} : memref<2x8x128xf32, #tpu.memory_space<vmem>>, vector<1x8x128xf32>,
    %c1 = arith.constant 1 : index
    %c0_12 = arith.constant 0 : index
    %c0_13 = arith.constant 0 : index
    %18 = vector.load %arg6[%c1, %c0_12, %c0_13] : memref<2x8x128xf32, #tpu.memory_space<vmem>>, vector<1x8x128xf32>
    %19 = vector.shape_cast %18 : vector<1x8x128xf32> to vector<8x128xf32>
    %20 = vector.shape_cast %6 : vector<32x128xf32> to vector<4x8x128xf32>
    %cst_14 = arith.constant dense<0.000000e+00> : vector<8x128xf32>
    %21 = vector.multi_reduction <add>, %20, %cst_14 [0] : vector<4x8x128xf32> to vector<8x128xf32>
    %22 = arith.addf %19, %21 : vector<8x128xf32>
    %c1_15 = arith.constant 1 : index
    %c0_16 = arith.constant 0 : index
    %c0_17 = arith.constant 0 : index
    %23 = vector.load %arg6[%c1_15, %c0_16, %c0_17] : memref<2x8x128xf32, #tpu.memory_space<vmem>>, vector<1x8x128xf32>
    %24 = vector.shape_cast %23 : vector<1x8x128xf32> to vector<8x128xf32>
    %25 = vector.shape_cast %22 : vector<8x128xf32> to vector<1x8x128xf32>
    tpu.vector_store %arg6[%c1_15, %c0_16, %c0_17], %25 {strides = array<i32>} : memref<2x8x128xf32, #tpu.memory_space<vmem>>, vector<1x8x128xf32>,
    %c0_i32_18 = arith.constant 0 : i32
    %26 = arith.cmpi eq, %arg1, %c0_i32_18 : i32
    %27 = arith.extui %26 : i1 to i32
    %c0_i32_19 = arith.constant 0 : i32
    %28 = arith.cmpi ne, %27, %c0_i32_19 : i32
    scf.if %28 {
      %c0_20 = arith.constant 0 : index
      %c0_21 = arith.constant 0 : index
      %c0_22 = arith.constant 0 : index
      %29 = vector.load %arg6[%c0_20, %c0_21, %c0_22] : memref<2x8x128xf32, #tpu.memory_space<vmem>>, vector<1x8x128xf32>
      %30 = vector.shape_cast %29 : vector<1x8x128xf32> to vector<8x128xf32>
      %cst_23 = arith.constant dense<0.000000e+00> : vector<128xf32>
      %31 = vector.multi_reduction <add>, %30, %cst_23 [0] : vector<8x128xf32> to vector<128xf32>
      %32 = vector.shape_cast %31 : vector<128xf32> to vector<1x128xf32>
      %c0_24 = arith.constant 0 : index
      %c0_25 = arith.constant 0 : index
      %c0_26 = arith.constant 0 : index
      %33 = vector.load %arg5[%c0_24, %c0_25, %c0_26] : memref<1x2x128xf32, #tpu.memory_space<vmem>>, vector<1x1x128xf32>
      %34 = vector.shape_cast %33 : vector<1x1x128xf32> to vector<1x128xf32>
      %35 = vector.shape_cast %32 : vector<1x128xf32> to vector<1x1x128xf32>
      tpu.vector_store %arg5[%c0_24, %c0_25, %c0_26], %35 {strides = array<i32>} : memref<1x2x128xf32, #tpu.memory_space<vmem>>, vector<1x1x128xf32>,
      %c1_27 = arith.constant 1 : index
      %c0_28 = arith.constant 0 : index
      %c0_29 = arith.constant 0 : index
      %36 = vector.load %arg6[%c1_27, %c0_28, %c0_29] : memref<2x8x128xf32, #tpu.memory_space<vmem>>, vector<1x8x128xf32>
      %37 = vector.shape_cast %36 : vector<1x8x128xf32> to vector<8x128xf32>
      %cst_30 = arith.constant dense<0.000000e+00> : vector<128xf32>
      %38 = vector.multi_reduction <add>, %37, %cst_30 [0] : vector<8x128xf32> to vector<128xf32>
      %39 = vector.shape_cast %38 : vector<128xf32> to vector<1x128xf32>
      %c0_31 = arith.constant 0 : index
      %c1_32 = arith.constant 1 : index
      %c0_33 = arith.constant 0 : index
      %40 = vector.load %arg5[%c0_31, %c1_32, %c0_33] : memref<1x2x128xf32, #tpu.memory_space<vmem>>, vector<1x1x128xf32>
      %41 = vector.shape_cast %40 : vector<1x1x128xf32> to vector<1x128xf32>
      %42 = vector.shape_cast %39 : vector<1x128xf32> to vector<1x1x128xf32>
      tpu.vector_store %arg5[%c0_31, %c1_32, %c0_33], %42 {strides = array<i32>} : memref<1x2x128xf32, #tpu.memory_space<vmem>>, vector<1x1x128xf32>,
    } else {
    }
    return
  }
  func.func @transform_0(%arg0: i32, %arg1: i32) -> (i32, i32) {
    %c1_i32 = arith.constant 1 : i32
    %0 = arith.muli %arg0, %c1_i32 : i32
    %1 = arith.addi %0, %arg1 : i32
    %c0_i32 = arith.constant 0 : i32
    %2 = arith.minsi %1, %c0_i32 : i32
    %c0_i32_0 = arith.constant 0 : i32
    %c0_i32_1 = arith.constant 0 : i32
    return %2, %c0_i32_0 : i32, i32
  }
  func.func @transform_1(%arg0: i32, %arg1: i32) -> (i32, i32) {
    %c1_i32 = arith.constant 1 : i32
    %0 = arith.muli %arg0, %c1_i32 : i32
    %1 = arith.addi %0, %arg1 : i32
    %c0_i32 = arith.constant 0 : i32
    %2 = arith.minsi %1, %c0_i32 : i32
    %c0_i32_0 = arith.constant 0 : i32
    %c0_i32_1 = arith.constant 0 : i32
    return %2, %c0_i32_0 : i32, i32
  }
  func.func @transform_2(%arg0: i32, %arg1: i32) -> (i32, i32) {
    %c1_i32 = arith.constant 1 : i32
    %0 = arith.muli %arg0, %c1_i32 : i32
    %1 = arith.addi %0, %arg1 : i32
    %c0_i32 = arith.constant 0 : i32
    %2 = arith.minsi %1, %c0_i32 : i32
    %c0_i32_0 = arith.constant 0 : i32
    %c0_i32_1 = arith.constant 0 : i32
    return %2, %c0_i32_0 : i32, i32
  }
  func.func @transform_3(%arg0: i32, %arg1: i32) -> (i32, i32, i32) {
    %c0_i32 = arith.constant 0 : i32
    %c0_i32_0 = arith.constant 0 : i32
    %c0_i32_1 = arith.constant 0 : i32
    return %arg0, %c0_i32, %c0_i32_0 : i32, i32, i32
  }
}

</mosaic_0001>

<llo_original>
// kernel: tpu_custom_call.1
$region0: #{tpu_custom_call.1}
  #allocation0 [shape = 'u32[]', space=smem, size = 0x4, offset = 0x4, fixed_abs, tag = 'smem constant byte address 0x4 - core index']
  #allocation1 [shape = 'u32[72,128]{1,0:T(1,128)}', space=vmem, size = 0x9000, scoped, tag = 'internal scratch']
  #allocation2 [shape = 'f32[2,8,128]{2,1,0:T(8,128)}', space=vmem, size = 0x2000, scoped, tag = 'scratch operand']
  %s0 = inlined_call_operand.vmem [shape: f32[32,128], index: 0, kind: input, shape index: {}]
  %s1 = inlined_call_operand.hbm [shape: f32[32,128], index: 1, kind: input, shape index: {}]
  %s2 = inlined_call_operand.vmem [shape: s32[32,128], index: 2, kind: input, shape index: {}]
  %s3 = inlined_call_operand.hbm [shape: f32[1,2,128], index: 3, kind: output, shape index: {}]
  %s4 = sld [smem:[#allocation0]]
  $region34: #{tpu_custom_call.1} parent=0
    _
  %s6 = ssub.s32 1, %s4
  %s7 = scalar_select 0, %s6, %s4
  $region1: #{tpu_custom_call.1} parent=0
    #allocation3 [shape = 'u8[16384]{0}', space=vmem, size = 0x4000, scoped, tag = 'input window, operand 1, single buffered']
    #allocation4 [shape = 's32[1]{0}', space=sflag, size = 0x4, scoped, tag = 'scoped memory for tpu_custom_call.1']
    #allocation5 [shape = 's32[1]{0}', space=sflag, size = 0x4, scoped, tag = 'scoped memory for tpu_custom_call.1']
    #allocation6 [shape = 'u8[1024]{0}', space=vmem, size = 0x400, scoped, tag = 'output window, operand 0, single buffered']
    %8 = vsyncpa [#allocation4], 0
    %9 = vsyncpa [#allocation5], 0
    // Predicated region
    $region2: #{tpu_custom_call.1} parent=1 // pred_check
      _
    $region3: #{tpu_custom_call.1} parent=1 // pred_check_branch
      %11 = sbr.rel (0) target = $region5
    $region4: #{tpu_custom_call.1} parent=1 // pred_region
      %s12 = sadd.s32 0, 0
      %p13 = scmp.lt.s32.totalorder %s12, 0
      %s14 = scalar_select %p13, %s12, 0
      %s15 = smul.u32 4, %s14
      %p16 = scmp.lt.s32.totalorder %s15, 3
      %s17 = scalar_select %p16, %s15, 3
      %s18 = smul.addr %s17, 8
      %s19 = scalar_lea.vmem %s0, %s18
      %s20 = sadd.s32 0, 0
      %p21 = scmp.lt.s32.totalorder %s20, 0
      %s22 = scalar_select %p21, %s20, 0
      %s23 = smul.u32 4, %s22
    $region5: #{tpu_custom_call.1} parent=1 // pred_fallthru
      _
    // Predicated region
    $region6: #{tpu_custom_call.1} parent=1 // pred_check
      _
    $region7: #{tpu_custom_call.1} parent=1 // pred_check_branch
      %25 = sbr.rel (0) target = $region9
    $region8: #{tpu_custom_call.1} parent=1 // pred_region
      %s26 = sadd.s32 0, 0
      %p27 = scmp.lt.s32.totalorder %s26, 0
      %s28 = scalar_select %p27, %s26, 0
      %s29 = smul.u32 4, %s28
      %31 = vsyncadd [#allocation4], 0
      %s32 = smul.addr %s29, 8
      %s33 = scalar_lea.hbm %s1, %s32
      %s34 = sshll.u32 %s33, 4
      %s35 = int_to_ptr.hbm [resolvable:$true] %s34
      %s36 = sshll.u32 [#allocation3], 4
      %s37 = int_to_ptr.vmem [resolvable:$true] %s36
      %42 = dma.hbm_to_vmem [thread:$0]  %s35, 512, %s37, [#allocation4], 128, 128, 8
    $region9: #{tpu_custom_call.1} parent=1 // pred_fallthru
      _
    // Predicated region
    $region10: #{tpu_custom_call.1} parent=1 // pred_check
      _
    $region11: #{tpu_custom_call.1} parent=1 // pred_check_branch
      %44 = sbr.rel (0) target = $region13
    $region12: #{tpu_custom_call.1} parent=1 // pred_region
      %s45 = sadd.s32 0, 0
      %p46 = scmp.lt.s32.totalorder %s45, 0
      %s47 = scalar_select %p46, %s45, 0
      %s48 = smul.u32 4, %s47
      %p49 = scmp.lt.s32.totalorder %s48, 3
      %s50 = scalar_select %p49, %s48, 3
      %s51 = smul.addr %s50, 8
      %s52 = scalar_lea.vmem %s2, %s51
      %s53 = sadd.s32 0, 0
      %p54 = scmp.lt.s32.totalorder %s53, 0
      %s55 = scalar_select %p54, %s53, 0
      %s56 = smul.u32 4, %s55
    $region13: #{tpu_custom_call.1} parent=1 // pred_fallthru
      _
    // Predicated region
    $region14: #{tpu_custom_call.1} parent=1 // pred_check
      _
    $region15: #{tpu_custom_call.1} parent=1 // pred_check_branch
      %58 = sbr.rel (0) target = $region17
    $region16: #{tpu_custom_call.1} parent=1 // pred_region
      %60 = dma.done [#allocation4], 512
    $region17: #{tpu_custom_call.1} parent=1 // pred_fallthru
      _
    %s61 = sadd.s32 0, 0
    %p62 = scmp.lt.s32.totalorder %s61, 0
    %s63 = scalar_select %p62, %s61, 0
    %s64 = smul.u32 4, %s63
    %p65 = scmp.lt.s32.totalorder %s64, 3
    %s66 = scalar_select %p65, %s64, 3
    %s67 = smul.addr %s66, 8
    %s68 = scalar_lea.vmem %s0, %s67
    %s69 = sadd.s32 0, 0
    %p70 = scmp.lt.s32.totalorder %s69, 0
    %s71 = scalar_select %p70, %s69, 0
    %s72 = smul.u32 4, %s71
    %p73 = scmp.lt.s32.totalorder %s72, 3
    %s74 = scalar_select %p73, %s72, 3
    %s75 = smul.addr %s74, 8
    %s76 = scalar_lea.vmem %s2, %s75
    %s77 = sadd.s32 0, 0
    %p78 = scmp.lt.s32.totalorder %s77, 0
    %s79 = scalar_select %p78, %s77, 0
    %s80 = smul.u32 4, %s79
    %p81 = scmp.lt.s32.totalorder %s80, 3
    %s82 = scalar_select %p81, %s80, 3
    %s83 = smul.addr %s82, 8
    %s84 = scalar_lea.vmem %s0, %s83
    %s85 = sadd.s32 0, 0
    %p86 = scmp.lt.s32.totalorder %s85, 0
    %s87 = scalar_select %p86, %s85, 0
    %s88 = smul.u32 4, %s87
    %s89 = sadd.s32 0, 0
    %p90 = scmp.lt.s32.totalorder %s89, 0
    %s91 = scalar_select %p90, %s89, 0
    %s92 = smul.u32 4, %s91
    %s93 = sadd.s32 0, 0
    %p94 = scmp.lt.s32.totalorder %s93, 0
    %s95 = scalar_select %p94, %s93, 0
    %s96 = smul.u32 4, %s95
    %p97 = scmp.lt.s32.totalorder %s96, 3
    %s98 = scalar_select %p97, %s96, 3
    %s99 = smul.addr %s98, 8
    %s100 = scalar_lea.vmem %s2, %s99
    %s101 = sadd.s32 0, 0
    %p102 = scmp.lt.s32.totalorder %s101, 0
    %s103 = scalar_select %p102, %s101, 0
    %s104 = smul.u32 4, %s103
    %p105 = scmp.eq.s32.totalorder 0, 0
    // Predicated region
    $region18: #{tpu_custom_call.1} parent=1 // pred_check
      %p106 = pneg %p105
    $region19: #{tpu_custom_call.1} parent=1 // pred_check_branch
      %108 = sbr.rel (%p106) target = $region21
    $region20: #{tpu_custom_call.1} parent=1 // pred_region
      %109 = vst [vmem:[#allocation2] sm:$0xff] 0.0
      %110 = vst [vmem:[#allocation2 + $0x8] sm:$0xff] 0.0
    $region21: #{tpu_custom_call.1} parent=1 // pred_fallthru
      _
    %v111 = vld [vmem:[%s84] sm:$0xff]
    %v112 = vld [vmem:[%s84 + $0x8] sm:$0xff]
    %v113 = vld [vmem:[%s84 + $0x10] sm:$0xff]
    %v114 = vld [vmem:[%s84 + $0x18] sm:$0xff]
    %v115 = vld [vmem:[#allocation3] sm:$0xff]
    %v116 = vld [vmem:[#allocation3 + $0x8] sm:$0xff]
    %v117 = vld [vmem:[#allocation3 + $0x10] sm:$0xff]
    %v118 = vld [vmem:[#allocation3 + $0x18] sm:$0xff]
    %v119 = vld [vmem:[%s100] sm:$0xff]
    %v120 = vld [vmem:[%s100 + $0x8] sm:$0xff]
    %v121 = vld [vmem:[%s100 + $0x10] sm:$0xff]
    %v122 = vld [vmem:[%s100 + $0x18] sm:$0xff]
    %vm123 = vcmp.ne.s32.totalorder %v119, 0
    %vm124 = vcmp.ne.s32.totalorder %v120, 0
    %vm125 = vcmp.ne.s32.totalorder %v121, 0
    %vm126 = vcmp.ne.s32.totalorder %v122, 0
    %v127 = vsel %vm123, 1, 0
    %v128 = vsel %vm124, 1, 0
    %v129 = vsel %vm125, 1, 0
    %v130 = vsel %vm126, 1, 0
    %v131 = vcvt.s32.f32 %v127
    %v132 = vcvt.s32.f32 %v128
    %v133 = vcvt.s32.f32 %v129
    %v134 = vcvt.s32.f32 %v130
    %v135 = vsub.f32 %v111, %v115
    %v136 = vsub.f32 %v112, %v116
    %v137 = vsub.f32 %v113, %v117
    %v138 = vsub.f32 %v114, %v118
    %v139 = vmul.f32 %v131, %v135
    %v140 = vmul.f32 %v132, %v136
    %v141 = vmul.f32 %v133, %v137
    %v142 = vmul.f32 %v134, %v138
    %v143 = vmul.f32 %v139, %v135
    %v144 = vmul.f32 %v140, %v136
    %v145 = vmul.f32 %v141, %v137
    %v146 = vmul.f32 %v142, %v138
    %v147 = vld [vmem:[#allocation2] sm:$0xff]
    %v148 = vadd.f32 %v143, %v144
    %v149 = vadd.f32 %v148, %v145
    %v150 = vadd.f32 %v149, %v146
    %v151 = vadd.f32 %v147, %v150
    %152 = vst [vmem:[#allocation2] sm:$0xff] %v151
    %s153 = scalar_lea.vmem [#allocation2], 8
    %v154 = vld [vmem:[%s153] sm:$0xff]
    %v155 = vadd.f32 %v131, %v132
    %v156 = vadd.f32 %v155, %v133
    %v157 = vadd.f32 %v156, %v134
    %v158 = vadd.f32 %v154, %v157
    %159 = vst [vmem:[%s153] sm:$0xff] %v158
    // Predicated region
    $region22: #{tpu_custom_call.1} parent=1 // pred_check
      %p160 = pneg %p105
    $region23: #{tpu_custom_call.1} parent=1 // pred_check_branch
      %162 = sbr.rel (%p160) target = $region25
    $region24: #{tpu_custom_call.1} parent=1 // pred_region
      %v163 = vld [vmem:[#allocation2] sm:$0xff]
      %v164 = vrot.slane %v163, 4
      %v165 = vadd.f32 %v163, %v164
      %v166 = vrot.slane %v165, 2
      %v167 = vadd.f32 %v165, %v166
      %v168 = vrot.slane %v167, 1
      %v169 = vadd.f32 %v167, %v168
      %170 = vst [vmem:[#allocation6] sm:$0x1] %v169
      %v171 = vld [vmem:[%s153] sm:$0xff]
      %v172 = vrot.slane %v171, 4
      %v173 = vadd.f32 %v171, %v172
      %v174 = vrot.slane %v173, 2
      %v175 = vadd.f32 %v173, %v174
      %v176 = vrot.slane %v175, 1
      %v177 = vadd.f32 %v175, %v176
      %178 = vst [vmem:[#allocation6 + $0x1] sm:$0x1] %v177
    $region25: #{tpu_custom_call.1} parent=1 // pred_fallthru
      _
    // Predicated region
    $region26: #{tpu_custom_call.1} parent=1 // pred_check
      _
    $region27: #{tpu_custom_call.1} parent=1 // pred_check_branch
      %180 = sbr.rel (0) target = $region29
    $region28: #{tpu_custom_call.1} parent=1 // pred_region
      %182 = vsyncadd [#allocation5], 0
      %s184 = sshll.u32 [#allocation6], 4
      %s185 = int_to_ptr.vmem [resolvable:$true] %s184
      %s186 = sshll.u32 %s3, 4
      %s187 = int_to_ptr.hbm [resolvable:$true] %s186
      %189 = dma.vmem_to_hbm [thread:$0]  %s185, 32, %s187, [#allocation5]
    $region29: #{tpu_custom_call.1} parent=1 // pred_fallthru
      _
    // Predicated region
    $region30: #{tpu_custom_call.1} parent=1 // pred_check
      _
    $region31: #{tpu_custom_call.1} parent=1 // pred_check_branch
      %191 = sbr.rel (0) target = $region33
    $region32: #{tpu_custom_call.1} parent=1 // pred_region
      %193 = dma.done [#allocation5], 32
    $region33: #{tpu_custom_call.1} parent=1 // pred_fallthru
      _
    %194 = vsyncpa [#allocation4], 1
    %195 = vsyncpa [#allocation5], 1

// kernel: tpu_custom_call.1
$region0: #{tpu_custom_call.1}
  #allocation0 [shape = 'u32[]', space=smem, size = 0x4, offset = 0x4, fixed_abs, tag = 'smem constant byte address 0x4 - core index']
  #allocation1 [shape = 'u32[72,128]{1,0:T(1,128)}', space=vmem, size = 0x9000, scoped, tag = 'internal scratch']
  #allocation2 [shape = 'f32[2,8,128]{2,1,0:T(8,128)}', space=vmem, size = 0x2000, scoped, tag = 'scratch operand']
  %s0 = inlined_call_operand.hbm [shape: f32[32,128], index: 0, kind: input, shape index: {}]
  %s1 = inlined_call_operand.hbm [shape: f32[32,128], index: 1, kind: input, shape index: {}]
  %s2 = inlined_call_operand.hbm [shape: s8[32,128], index: 2, kind: input, shape index: {}]
  %s3 = inlined_call_operand.hbm [shape: f32[1,2,128], index: 3, kind: output, shape index: {}]
  %s4 = sld [smem:[#allocation0]]
  $region42: #{tpu_custom_call.1} parent=0
    _
  %s6 = ssub.s32 1, %s4
  %s7 = scalar_select 0, %s6, %s4
  $region1: #{tpu_custom_call.1} parent=0
    #allocation3 [shape = 'u8[16384]{0}', space=vmem, size = 0x4000, scoped, tag = 'input window, operand 0, single buffered']
    #allocation4 [shape = 's32[1]{0}', space=sflag, size = 0x4, scoped, tag = 'scoped memory for tpu_custom_call.1']
    #allocation5 [shape = 's32[1]{0}', space=sflag, size = 0x4, scoped, tag = 'scoped memory for tpu_custom_call.1']
    #allocation6 [shape = 'u8[16384]{0}', space=vmem, size = 0x4000, scoped, tag = 'input window, operand 1, single buffered']
    #allocation7 [shape = 's32[1]{0}', space=sflag, size = 0x4, scoped, tag = 'scoped memory for tpu_custom_call.1']
    #allocation8 [shape = 'u8[4096]{0}', space=vmem, size = 0x1000, scoped, tag = 'input window, operand 2, single buffered']
    #allocation9 [shape = 'u8[1024]{0}', space=vmem, size = 0x400, scoped, tag = 'output window, operand 0, single buffered']
    %8 = vsyncpa [#allocation4], 0
    %9 = vsyncpa [#allocation7], 0
    %10 = vsyncpa [#allocation5], 0
    // Predicated region
    $region2: #{tpu_custom_call.1} parent=1 // pred_check
      _
    $region3: #{tpu_custom_call.1} parent=1 // pred_check_branch
      %12 = sbr.rel (0) target = $region5
    $region4: #{tpu_custom_call.1} parent=1 // pred_region
      %s13 = sadd.s32 0, 0
      %p14 = scmp.lt.s32.totalorder %s13, 0
      %s15 = scalar_select %p14, %s13, 0
      %s16 = smul.u32 4, %s15
      %18 = vsyncadd [#allocation4], 0
      %s19 = smul.addr %s16, 8
      %s20 = scalar_lea.hbm %s0, %s19
      %s21 = sshll.u32 %s20, 4
      %s22 = int_to_ptr.hbm [resolvable:$true] %s21
      %s23 = sshll.u32 [#allocation3], 4
      %s24 = int_to_ptr.vmem [resolvable:$true] %s23
      %29 = dma.hbm_to_vmem [thread:$0]  %s22, 512, %s24, [#allocation4], 128, 128, 8
    $region5: #{tpu_custom_call.1} parent=1 // pred_fallthru
      _
    // Predicated region
    $region6: #{tpu_custom_call.1} parent=1 // pred_check
      _
    $region7: #{tpu_custom_call.1} parent=1 // pred_check_branch
      %31 = sbr.rel (0) target = $region9
    $region8: #{tpu_custom_call.1} parent=1 // pred_region
      %s32 = sadd.s32 0, 0
      %p33 = scmp.lt.s32.totalorder %s32, 0
      %s34 = scalar_select %p33, %s32, 0
      %s35 = smul.u32 4, %s34
      %37 = vsyncadd [#allocation7], 0
      %s38 = smul.addr %s35, 8
      %s39 = scalar_lea.hbm %s1, %s38
      %s40 = sshll.u32 %s39, 4
      %s41 = int_to_ptr.hbm [resolvable:$true] %s40
      %s42 = sshll.u32 [#allocation6], 4
      %s43 = int_to_ptr.vmem [resolvable:$true] %s42
      %48 = dma.hbm_to_vmem [thread:$0]  %s41, 512, %s43, [#allocation7], 128, 128, 8
    $region9: #{tpu_custom_call.1} parent=1 // pred_fallthru
      _
    // Predicated region
    $region10: #{tpu_custom_call.1} parent=1 // pred_check
      _
    $region11: #{tpu_custom_call.1} parent=1 // pred_check_branch
      %50 = sbr.rel (0) target = $region13
    $region12: #{tpu_custom_call.1} parent=1 // pred_region
      %s51 = sadd.s32 0, 0
      %p52 = scmp.lt.s32.totalorder %s51, 0
      %s53 = scalar_select %p52, %s51, 0
      %55 = vsyncadd [#allocation7], 0
      %s56 = smul.addr %s53, 8
      %s57 = scalar_lea.hbm %s2, %s56
      %s59 = sshll.u32 %s57, 4
      %s60 = int_to_ptr.hbm [resolvable:$true] %s59
      %s61 = sshll.u32 [#allocation8], 4
      %s62 = int_to_ptr.vmem [resolvable:$true] %s61
      %64 = dma.hbm_to_vmem [thread:$0]  %s60, 128, %s62, [#allocation7]
    $region13: #{tpu_custom_call.1} parent=1 // pred_fallthru
      _
    // Predicated region
    $region14: #{tpu_custom_call.1} parent=1 // pred_check
      _
    $region15: #{tpu_custom_call.1} parent=1 // pred_check_branch
      %66 = sbr.rel (0) target = $region17
    $region16: #{tpu_custom_call.1} parent=1 // pred_region
      %68 = dma.done [#allocation4], 512
    $region17: #{tpu_custom_call.1} parent=1 // pred_fallthru
      _
    // Predicated region
    $region18: #{tpu_custom_call.1} parent=1 // pred_check
      _
    $region19: #{tpu_custom_call.1} parent=1 // pred_check_branch
      %70 = sbr.rel (0) target = $region21
    $region20: #{tpu_custom_call.1} parent=1 // pred_region
      %72 = dma.done [#allocation7], 512
    $region21: #{tpu_custom_call.1} parent=1 // pred_fallthru
      _
    // Predicated region
    $region22: #{tpu_custom_call.1} parent=1 // pred_check
      _
    $region23: #{tpu_custom_call.1} parent=1 // pred_check_branch
      %74 = sbr.rel (0) target = $region25
    $region24: #{tpu_custom_call.1} parent=1 // pred_region
      %76 = dma.done [#allocation7], 128
    $region25: #{tpu_custom_call.1} parent=1 // pred_fallthru
      _
    %s77 = sadd.s32 0, 0
    %p78 = scmp.lt.s32.totalorder %s77, 0
    %s79 = scalar_select %p78, %s77, 0
    %s80 = smul.u32 4, %s79
    %s81 = sadd.s32 0, 0
    %p82 = scmp.lt.s32.totalorder %s81, 0
    %s83 = scalar_select %p82, %s81, 0
    %s84 = smul.u32 4, %s83
    %s85 = sadd.s32 0, 0
    %p86 = scmp.lt.s32.totalorder %s85, 0
    %s87 = scalar_select %p86, %s85, 0
    %p88 = scmp.eq.s32.totalorder 0, 0
    // Predicated region
    $region26: #{tpu_custom_call.1} parent=1 // pred_check
      %p89 = pneg %p88
    $region27: #{tpu_custom_call.1} parent=1 // pred_check_branch
      %91 = sbr.rel (%p89) target = $region29
    $region28: #{tpu_custom_call.1} parent=1 // pred_region
      %92 = vst [vmem:[#allocation2] sm:$0xff] 0.0
      %93 = vst [vmem:[#allocation2 + $0x8] sm:$0xff] 0.0
    $region29: #{tpu_custom_call.1} parent=1 // pred_fallthru
      _
    %v94 = vld [vmem:[#allocation3] sm:$0xff]
    %v95 = vld [vmem:[#allocation3 + $0x8] sm:$0xff]
    %v96 = vld [vmem:[#allocation3 + $0x10] sm:$0xff]
    %v97 = vld [vmem:[#allocation3 + $0x18] sm:$0xff]
    %v98 = vld [vmem:[#allocation6] sm:$0xff]
    %v99 = vld [vmem:[#allocation6 + $0x8] sm:$0xff]
    %v100 = vld [vmem:[#allocation6 + $0x10] sm:$0xff]
    %v101 = vld [vmem:[#allocation6 + $0x18] sm:$0xff]
    %v102 = vld [vmem:[#allocation8] sm:$0xff]
    %v103 = vunpack.c.0.s8 %v102
    %v104 = vunpack.c.1.s8 %v102
    %v105 = vunpack.c.2.s8 %v102
    %v106 = vunpack.c.3.s8 %v102
    %v107 = vcvt.s32.f32 %v103
    %v108 = vcvt.s32.f32 %v104
    %v109 = vcvt.s32.f32 %v105
    %v110 = vcvt.s32.f32 %v106
    %v111 = vsub.f32 %v94, %v98
    %v112 = vsub.f32 %v95, %v99
    %v113 = vsub.f32 %v96, %v100
    %v114 = vsub.f32 %v97, %v101
    %v115 = vmul.f32 %v107, %v111
    %v116 = vmul.f32 %v108, %v112
    %v117 = vmul.f32 %v109, %v113
    %v118 = vmul.f32 %v110, %v114
    %v119 = vmul.f32 %v115, %v111
    %v120 = vmul.f32 %v116, %v112
    %v121 = vmul.f32 %v117, %v113
    %v122 = vmul.f32 %v118, %v114
    %v123 = vld [vmem:[#allocation2] sm:$0xff]
    %v124 = vadd.f32 %v119, %v120
    %v125 = vadd.f32 %v124, %v121
    %v126 = vadd.f32 %v125, %v122
    %v127 = vadd.f32 %v123, %v126
    %128 = vst [vmem:[#allocation2] sm:$0xff] %v127
    %s129 = scalar_lea.vmem [#allocation2], 8
    %v130 = vld [vmem:[%s129] sm:$0xff]
    %v131 = vadd.f32 %v107, %v108
    %v132 = vadd.f32 %v131, %v109
    %v133 = vadd.f32 %v132, %v110
    %v134 = vadd.f32 %v130, %v133
    %135 = vst [vmem:[%s129] sm:$0xff] %v134
    // Predicated region
    $region30: #{tpu_custom_call.1} parent=1 // pred_check
      %p136 = pneg %p88
    $region31: #{tpu_custom_call.1} parent=1 // pred_check_branch
      %138 = sbr.rel (%p136) target = $region33
    $region32: #{tpu_custom_call.1} parent=1 // pred_region
      %v139 = vld [vmem:[#allocation2] sm:$0xff]
      %v140 = vrot.slane %v139, 4
      %v141 = vadd.f32 %v139, %v140
      %v142 = vrot.slane %v141, 2
      %v143 = vadd.f32 %v141, %v142
      %v144 = vrot.slane %v143, 1
      %v145 = vadd.f32 %v143, %v144
      %146 = vst [vmem:[#allocation9] sm:$0x1] %v145
      %v147 = vld [vmem:[%s129] sm:$0xff]
      %v148 = vrot.slane %v147, 4
      %v149 = vadd.f32 %v147, %v148
      %v150 = vrot.slane %v149, 2
      %v151 = vadd.f32 %v149, %v150
      %v152 = vrot.slane %v151, 1
      %v153 = vadd.f32 %v151, %v152
      %154 = vst [vmem:[#allocation9 + $0x1] sm:$0x1] %v153
    $region33: #{tpu_custom_call.1} parent=1 // pred_fallthru
      _
    // Predicated region
    $region34: #{tpu_custom_call.1} parent=1 // pred_check
      _
    $region35: #{tpu_custom_call.1} parent=1 // pred_check_branch
      %156 = sbr.rel (0) target = $region37
    $region36: #{tpu_custom_call.1} parent=1 // pred_region
      %158 = vsyncadd [#allocation5], 0
      %s160 = sshll.u32 [#allocation9], 4
      %s161 = int_to_ptr.vmem [resolvable:$true] %s160
      %s162 = sshll.u32 %s3, 4
      %s163 = int_to_ptr.hbm [resolvable:$true] %s162
      %165 = dma.vmem_to_hbm [thread:$0]  %s161, 32, %s163, [#allocation5]
    $region37: #{tpu_custom_call.1} parent=1 // pred_fallthru
      _
    // Predicated region
    $region38: #{tpu_custom_call.1} parent=1 // pred_check
      _
    $region39: #{tpu_custom_call.1} parent=1 // pred_check_branch
      %167 = sbr.rel (0) target = $region41
    $region40: #{tpu_custom_call.1} parent=1 // pred_region
      %169 = dma.done [#allocation5], 32
    $region41: #{tpu_custom_call.1} parent=1 // pred_fallthru
      _
    %170 = vsyncpa [#allocation4], 1
    %171 = vsyncpa [#allocation7], 1
    %172 = vsyncpa [#allocation5], 1

</llo_original>
